<compile_context>
chip_gen: v5e
topology: v5e:2x2
jax: 0.10.0
libtpu: 0.0.40
codegen_flags: <defaults>
</compile_context>

<pallas_src>
import jax
import jax.numpy as jnp
from jax.experimental import pallas as pl
from jax.experimental.pallas import tpu as pltpu

EPS = 1e-8  # matches torch.nn.functional.cosine_similarity default eps


def dd_kernel(emb_ref, labT_ref, delta_ref, scale_ref, invf_ref, out_ref):
    k = pl.program_id(2)
    last_k = pl.num_programs(2) - 1

    # MXU: canonical (M, K) x (K, N) feed with f32 accumulation.
    dots = jnp.dot(emb_ref[...], labT_ref[...],
                   preferred_element_type=jnp.float32)

    # Accumulate directly into the resident f32 output tile (no scratch buffer).
    @pl.when(k == 0)
    def _():
        out_ref[...] = dots

    @pl.when(k > 0)
    def _():
        out_ref[...] += dots

    # Finalize: out = (1 - cos) * delta = delta - dots * inv_f * (delta / ||t||)
    @pl.when(k == last_k)
    def _():
        out_ref[...] = (delta_ref[...]
                        - out_ref[...] * invf_ref[...] * scale_ref[...])


def _pad_axis(x, axis, new_size):
    pad = new_size - x.shape[axis]
    if pad == 0:
        return x
    widths = [(0, 0)] * x.ndim
    widths[axis] = (0, pad)
    return jnp.pad(x, widths)


def dd_forward(embeddings, labels_embedding, dis_delta,
               *, tb=512, tc=1024, tk=512, use_bf16_matmul=True):
    """Forward of DD: (B, C) cosine distances scaled by dis_delta."""
    B, D = embeddings.shape
    C, _ = labels_embedding.shape

    emb_f32 = embeddings.astype(jnp.float32)
    lab_f32 = labels_embedding.astype(jnp.float32)
    delta = dis_delta.reshape(1, C).astype(jnp.float32)

    # Hoisted norm work (once, in f32, before any cast/padding):
    #   inv_f_b  = 1 / max(||f_b||, eps)           -> (B, 1)
    #   scale_c  = delta_c / max(||t_c||, eps)     -> (1, C)
    f_ssq = jnp.sum(emb_f32 * emb_f32, axis=-1, keepdims=True)
    inv_f = jax.lax.rsqrt(jnp.maximum(f_ssq, EPS * EPS))
    t_ssq = jnp.sum(lab_f32 * lab_f32, axis=-1)
    scale = delta * jax.lax.rsqrt(jnp.maximum(t_ssq, EPS * EPS))[None, :]

    # Matmul operands: bf16 in HBM halves DMA traffic; accumulation stays f32.
    mm_dtype = jnp.bfloat16 if use_bf16_matmul else jnp.float32
    emb = emb_f32.astype(mm_dtype)
    labT = lab_f32.T.astype(mm_dtype)            # (D, C): canonical (K, N) feed

    # --- Padding + tile selection (always MXU/lane aligned, no full-dim cliff) ---
    # Class axis = output lanes: multiple of 128 (unmasked full-width stores).
    C128 = 128 * pl.cdiv(C, 128)
    tc = min(tc, C128)
    C_pad = tc * pl.cdiv(C128, tc)
    # Batch axis = output sublanes: multiple of 8.
    B8 = 8 * pl.cdiv(B, 8)
    tb = min(tb, B8)
    B_pad = tb * pl.cdiv(B8, tb)
    # Feature (contraction) axis: multiple of 128; zero padding preserves dots.
    D128 = 128 * pl.cdiv(D, 128)
    tk = min(tk, D128)
    D_pad = tk * pl.cdiv(D128, tk)

    emb = _pad_axis(_pad_axis(emb, 0, B_pad), 1, D_pad)     # (B_pad, D_pad)
    labT = _pad_axis(_pad_axis(labT, 0, D_pad), 1, C_pad)   # (D_pad, C_pad)
    delta = _pad_axis(delta, 1, C_pad)                       # (1, C_pad)
    scale = _pad_axis(scale, 1, C_pad)                       # (1, C_pad)
    inv_f = _pad_axis(inv_f, 0, B_pad)                       # (B_pad, 1)

    grid = (B_pad // tb, C_pad // tc, D_pad // tk)
    itemsize = 2 if use_bf16_matmul else 4

    out = pl.pallas_call(
        dd_kernel,
        out_shape=jax.ShapeDtypeStruct((B_pad, C_pad), jnp.float32),
        grid_spec=pltpu.PrefetchScalarGridSpec(
            num_scalar_prefetch=0,
            grid=grid,
            in_specs=[
                pl.BlockSpec((tb, tk), lambda i, j, k: (i, k)),   # embeddings
                pl.BlockSpec((tk, tc), lambda i, j, k: (k, j)),   # labels^T
                pl.BlockSpec((1, tc), lambda i, j, k: (0, j)),    # dis_delta
                pl.BlockSpec((1, tc), lambda i, j, k: (0, j)),    # delta / ||t||
                pl.BlockSpec((tb, 1), lambda i, j, k: (i, 0)),    # 1 / ||f||
            ],
            out_specs=pl.BlockSpec((tb, tc), lambda i, j, k: (i, j)),
        ),
        compiler_params=pltpu.CompilerParams(
            dimension_semantics=("parallel", "parallel", "arbitrary")),
        cost_estimate=pl.CostEstimate(
            flops=2 * B_pad * C_pad * D_pad,
            transcendentals=0,
            bytes_accessed=(itemsize * (B_pad * D_pad + D_pad * C_pad)
                            + 4 * (B_pad * C_pad + 2 * C_pad + B_pad))),
    )(emb, labT, delta, scale, inv_f)

    return out[:B, :C]


def dd_reference(embeddings, labels_embedding, dis_delta):
    dots = embeddings @ labels_embedding.T
    fn = jnp.maximum(jnp.linalg.norm(embeddings, axis=-1, keepdims=True), EPS)
    tn = jnp.maximum(jnp.linalg.norm(labels_embedding, axis=-1, keepdims=True), EPS)
    cos = dots / (fn * tn.T)
    return (1.0 - cos) * dis_delta


if __name__ == "__main__":
    # Small shapes consistent with the module's forward:
    #   embeddings: (batch_size, feature_dim), labels_embedding: (cls_num, feature_dim)
    B, C, D = 8, 16, 32
    key = jax.random.PRNGKey(0)
    k_emb, k_lab, k_delta = jax.random.split(key, 3)

    embeddings = jax.random.normal(k_emb, (B, D), dtype=jnp.float32)
    # Deterministic synthetic stand-in for the ICA-reduced KG genre embedding buffer.
    labels_embedding = jax.random.normal(k_lab, (C, D), dtype=jnp.float32)
    # Module initializes dis_delta = ones([1, C]); perturb slightly so the
    # per-class scaling path is actually exercised.
    dis_delta = jnp.ones((1, C), jnp.float32) \
        + 0.05 * jax.random.normal(k_delta, (1, C), jnp.float32)

    ref = dd_reference(embeddings, labels_embedding, dis_delta)

    # Default fast path: bf16 operands in HBM, f32 accumulation.
    out = jax.block_until_ready(dd_forward(embeddings, labels_embedding, dis_delta))
    assert out.shape == (B, C)
    assert jnp.allclose(out, ref, atol=2e-2, rtol=2e-2), \
        float(jnp.max(jnp.abs(out - ref)))

    # Full-f32 path for tight-tolerance verification.
    out_f32 = jax.block_until_ready(
        dd_forward(embeddings, labels_embedding, dis_delta, use_bf16_matmul=False))
    assert jnp.allclose(out_f32, ref, atol=1e-5, rtol=1e-5), \
        float(jnp.max(jnp.abs(out_f32 - ref)))

    # TODO(synk): tri_loss / hinge_loss are training-time losses (not part of forward()),
    # and the genre_info/ICA buffer construction is host-side preprocessing; both omitted.
    print("KERNEL_OK")
</pallas_src>

<mosaic_0001>
module attributes {stable_mosaic.version = 11 : i64} {
  func.func @dd_kernel(%arg0: i32, %arg1: i32, %arg2: i32, %arg3: memref<8x128xbf16, #tpu.memory_space<vmem>>, %arg4: memref<128x128xbf16, #tpu.memory_space<vmem>>, %arg5: memref<1x128xf32, #tpu.memory_space<vmem>>, %arg6: memref<1x128xf32, #tpu.memory_space<vmem>>, %arg7: memref<8x1xf32, #tpu.memory_space<vmem>>, %arg8: memref<8x128xf32, #tpu.memory_space<vmem>>) attributes {dimension_semantics = [#tpu.dimension_semantics<parallel>, #tpu.dimension_semantics<parallel>, #tpu.dimension_semantics<arbitrary>], iteration_bounds = array<i64: 1, 1, 1>, scalar_prefetch = 0 : i64, scratch_operands = 0 : i64, tpu.core_type = #tpu.core_type<tc>, window_params = [{transform_indices = @transform_0, window_bounds = array<i64: 8, 128>}, {transform_indices = @transform_1, window_bounds = array<i64: 128, 128>}, {transform_indices = @transform_2, window_bounds = array<i64: 1, 128>}, {transform_indices = @transform_3, window_bounds = array<i64: 1, 128>}, {transform_indices = @transform_4, window_bounds = array<i64: 8, 1>}, {transform_indices = @transform_5, window_bounds = array<i64: 8, 128>}]} {
    %c0 = arith.constant 0 : index
    %c0_0 = arith.constant 0 : index
    %0 = vector.load %arg3[%c0, %c0_0] : memref<8x128xbf16, #tpu.memory_space<vmem>>, vector<8x128xbf16>
    %c0_1 = arith.constant 0 : index
    %c0_2 = arith.constant 0 : index
    %1 = vector.load %arg4[%c0_1, %c0_2] : memref<128x128xbf16, #tpu.memory_space<vmem>>, vector<128x128xbf16>
    %cst = arith.constant dense<0.000000e+00> : vector<8x128xf32>
    %2 = tpu.matmul %0, %1, %cst {dimension_numbers = #tpu.dot_dimension_numbers<[1], [0], [0], [1], [0, 0, 1, 1], [], []>} : vector<8x128xbf16>, vector<128x128xbf16>, vector<8x128xf32> -> vector<8x128xf32>
    %c0_i32 = arith.constant 0 : i32
    %3 = arith.cmpi eq, %arg2, %c0_i32 : i32
    %4 = arith.extui %3 : i1 to i32
    %c0_i32_3 = arith.constant 0 : i32
    %5 = arith.cmpi ne, %4, %c0_i32_3 : i32
    scf.if %5 {
      %c0_8 = arith.constant 0 : index
      %c0_9 = arith.constant 0 : index
      %12 = vector.load %arg8[%c0_8, %c0_9] : memref<8x128xf32, #tpu.memory_space<vmem>>, vector<8x128xf32>
      tpu.vector_store %arg8[%c0_8, %c0_9], %2 {strides = array<i32>} : memref<8x128xf32, #tpu.memory_space<vmem>>, vector<8x128xf32>,
    } else {
    }
    %c0_i32_4 = arith.constant 0 : i32
    %6 = arith.cmpi sgt, %arg2, %c0_i32_4 : i32
    %7 = arith.extui %6 : i1 to i32
    %c0_i32_5 = arith.constant 0 : i32
    %8 = arith.cmpi ne, %7, %c0_i32_5 : i32
    scf.if %8 {
      %c0_8 = arith.constant 0 : index
      %c0_9 = arith.constant 0 : index
      %12 = vector.load %arg8[%c0_8, %c0_9] : memref<8x128xf32, #tpu.memory_space<vmem>>, vector<8x128xf32>
      %13 = arith.addf %12, %2 : vector<8x128xf32>
      %c0_10 = arith.constant 0 : index
      %c0_11 = arith.constant 0 : index
      %14 = vector.load %arg8[%c0_10, %c0_11] : memref<8x128xf32, #tpu.memory_space<vmem>>, vector<8x128xf32>
      tpu.vector_store %arg8[%c0_10, %c0_11], %13 {strides = array<i32>} : memref<8x128xf32, #tpu.memory_space<vmem>>, vector<8x128xf32>,
    } else {
    }
    %c0_i32_6 = arith.constant 0 : i32
    %9 = arith.cmpi eq, %arg2, %c0_i32_6 : i32
    %10 = arith.extui %9 : i1 to i32
    %c0_i32_7 = arith.constant 0 : i32
    %11 = arith.cmpi ne, %10, %c0_i32_7 : i32
    scf.if %11 {
      %c0_8 = arith.constant 0 : index
      %c0_9 = arith.constant 0 : index
      %12 = vector.load %arg5[%c0_8, %c0_9] : memref<1x128xf32, #tpu.memory_space<vmem>>, vector<1x128xf32>
      %c0_10 = arith.constant 0 : index
      %c0_11 = arith.constant 0 : index
      %13 = vector.load %arg8[%c0_10, %c0_11] : memref<8x128xf32, #tpu.memory_space<vmem>>, vector<8x128xf32>
      %c0_12 = arith.constant 0 : index
      %c0_13 = arith.constant 0 : index
      %14 = vector.load %arg7[%c0_12, %c0_13] : memref<8x1xf32, #tpu.memory_space<vmem>>, vector<8x1xf32>
      %15 = vector.broadcast %14 : vector<8x1xf32> to vector<8x128xf32>
      %16 = arith.mulf %13, %15 : vector<8x128xf32>
      %c0_14 = arith.constant 0 : index
      %c0_15 = arith.constant 0 : index
      %17 = vector.load %arg6[%c0_14, %c0_15] : memref<1x128xf32, #tpu.memory_space<vmem>>, vector<1x128xf32>
      %18 = vector.broadcast %17 : vector<1x128xf32> to vector<8x128xf32>
      %19 = arith.mulf %16, %18 : vector<8x128xf32>
      %20 = vector.broadcast %12 : vector<1x128xf32> to vector<8x128xf32>
      %21 = arith.subf %20, %19 : vector<8x128xf32>
      %c0_16 = arith.constant 0 : index
      %c0_17 = arith.constant 0 : index
      %22 = vector.load %arg8[%c0_16, %c0_17] : memref<8x128xf32, #tpu.memory_space<vmem>>, vector<8x128xf32>
      tpu.vector_store %arg8[%c0_16, %c0_17], %21 {strides = array<i32>} : memref<8x128xf32, #tpu.memory_space<vmem>>, vector<8x128xf32>,
    } else {
    }
    return
  }
  func.func @transform_0(%arg0: i32, %arg1: i32, %arg2: i32) -> (i32, i32) {
    %c0_i32 = arith.constant 0 : i32
    return %arg0, %arg2 : i32, i32
  }
  func.func @transform_1(%arg0: i32, %arg1: i32, %arg2: i32) -> (i32, i32) {
    %c0_i32 = arith.constant 0 : i32
    return %arg2, %arg1 : i32, i32
  }
  func.func @transform_2(%arg0: i32, %arg1: i32, %arg2: i32) -> (i32, i32) {
    %c0_i32 = arith.constant 0 : i32
    %c0_i32_0 = arith.constant 0 : i32
    return %c0_i32, %arg1 : i32, i32
  }
  func.func @transform_3(%arg0: i32, %arg1: i32, %arg2: i32) -> (i32, i32) {
    %c0_i32 = arith.constant 0 : i32
    %c0_i32_0 = arith.constant 0 : i32
    return %c0_i32, %arg1 : i32, i32
  }
  func.func @transform_4(%arg0: i32, %arg1: i32, %arg2: i32) -> (i32, i32) {
    %c0_i32 = arith.constant 0 : i32
    %c0_i32_0 = arith.constant 0 : i32
    return %arg0, %c0_i32 : i32, i32
  }
  func.func @transform_5(%arg0: i32, %arg1: i32, %arg2: i32) -> (i32, i32) {
    %c0_i32 = arith.constant 0 : i32
    return %arg0, %arg1 : i32, i32
  }
}

</mosaic_0001>

<llo_original>
// kernel: tpu_custom_call.1
$region0: #{tpu_custom_call.1}
  #allocation0 [shape = 'u32[]', space=smem, size = 0x4, offset = 0x4, fixed_abs, tag = 'smem constant byte address 0x4 - core index']
  #allocation1 [shape = 'u32[72,128]{1,0:T(1,128)}', space=vmem, size = 0x9000, scoped, tag = 'internal scratch']
  %s0 = inlined_call_operand.vmem [shape: bf16[8,128], index: 0, kind: input, shape index: {}]
  %s1 = inlined_call_operand.hbm [shape: bf16[128,128], index: 1, kind: input, shape index: {}]
  %s2 = inlined_call_operand.vmem [shape: f32[1,128], index: 2, kind: input, shape index: {}]
  %s3 = inlined_call_operand.vmem [shape: f32[1,128], index: 3, kind: input, shape index: {}]
  %s4 = inlined_call_operand.vmem [shape: f32[8,1], index: 4, kind: input, shape index: {}]
  %s5 = inlined_call_operand.hbm [shape: f32[8,128], index: 5, kind: output, shape index: {}]
  %s6 = sld [smem:[#allocation0]]
  $region46: #{tpu_custom_call.1} parent=0
    _
  %s8 = ssub.s32 1, %s6
  %s9 = scalar_select 0, %s8, %s6
  $region1: #{tpu_custom_call.1} parent=0
    #allocation2 [shape = 'u8[32768]{0}', space=vmem, size = 0x8000, scoped, tag = 'input window, operand 1, single buffered']
    #allocation3 [shape = 's32[1]{0}', space=sflag, size = 0x4, scoped, tag = 'scoped memory for tpu_custom_call.1']
    #allocation4 [shape = 's32[1]{0}', space=sflag, size = 0x4, scoped, tag = 'scoped memory for tpu_custom_call.1']
    #allocation5 [shape = 'u8[4096]{0}', space=vmem, size = 0x1000, scoped, tag = 'output window, operand 0, single buffered']
    %10 = vsyncpa [#allocation3], 0
    %11 = vsyncpa [#allocation4], 0
    // Predicated region
    $region2: #{tpu_custom_call.1} parent=1 // pred_check
      _
    $region3: #{tpu_custom_call.1} parent=1 // pred_check_branch
      %13 = sbr.rel (0) target = $region5
    $region4: #{tpu_custom_call.1} parent=1 // pred_region
      _
    $region5: #{tpu_custom_call.1} parent=1 // pred_fallthru
      _
    // Predicated region
    $region6: #{tpu_custom_call.1} parent=1 // pred_check
      _
    $region7: #{tpu_custom_call.1} parent=1 // pred_check_branch
      %15 = sbr.rel (0) target = $region9
    $region8: #{tpu_custom_call.1} parent=1 // pred_region
      %17 = vsyncadd [#allocation3], 0
      %s18 = sshll.u32 %s1, 4
      %s19 = int_to_ptr.hbm [resolvable:$true] %s18
      %s20 = sshll.u32 [#allocation2], 4
      %s21 = int_to_ptr.vmem [resolvable:$true] %s20
      %26 = dma.hbm_to_vmem [thread:$0]  %s19, 1024, %s21, [#allocation3], 64, 64, 4
    $region9: #{tpu_custom_call.1} parent=1 // pred_fallthru
      _
    // Predicated region
    $region10: #{tpu_custom_call.1} parent=1 // pred_check
      _
    $region11: #{tpu_custom_call.1} parent=1 // pred_check_branch
      %28 = sbr.rel (0) target = $region13
    $region12: #{tpu_custom_call.1} parent=1 // pred_region
      _
    $region13: #{tpu_custom_call.1} parent=1 // pred_fallthru
      _
    // Predicated region
    $region14: #{tpu_custom_call.1} parent=1 // pred_check
      _
    $region15: #{tpu_custom_call.1} parent=1 // pred_check_branch
      %30 = sbr.rel (0) target = $region17
    $region16: #{tpu_custom_call.1} parent=1 // pred_region
      _
    $region17: #{tpu_custom_call.1} parent=1 // pred_fallthru
      _
    // Predicated region
    $region18: #{tpu_custom_call.1} parent=1 // pred_check
      _
    $region19: #{tpu_custom_call.1} parent=1 // pred_check_branch
      %32 = sbr.rel (0) target = $region21
    $region20: #{tpu_custom_call.1} parent=1 // pred_region
      _
    $region21: #{tpu_custom_call.1} parent=1 // pred_fallthru
      _
    // Predicated region
    $region22: #{tpu_custom_call.1} parent=1 // pred_check
      _
    $region23: #{tpu_custom_call.1} parent=1 // pred_check_branch
      %34 = sbr.rel (0) target = $region25
    $region24: #{tpu_custom_call.1} parent=1 // pred_region
      %36 = dma.done [#allocation3], 1024
    $region25: #{tpu_custom_call.1} parent=1 // pred_fallthru
      _
    %v37 = vld [vmem:[%s0] sm:$0xf]
    %v38 = vld [vmem:[#allocation2] sm:$0xf]
    %v39 = vld [vmem:[#allocation2 + $0x4] sm:$0xf]
    %v40 = vld [vmem:[#allocation2 + $0x8] sm:$0xf]
    %v41 = vld [vmem:[#allocation2 + $0xc] sm:$0xf]
    %v42 = vld [vmem:[#allocation2 + $0x10] sm:$0xf]
    %v43 = vld [vmem:[#allocation2 + $0x14] sm:$0xf]
    %v44 = vld [vmem:[#allocation2 + $0x18] sm:$0xf]
    %v45 = vld [vmem:[#allocation2 + $0x1c] sm:$0xf]
    %v46 = vld [vmem:[#allocation2 + $0x20] sm:$0xf]
    %v47 = vld [vmem:[#allocation2 + $0x24] sm:$0xf]
    %v48 = vld [vmem:[#allocation2 + $0x28] sm:$0xf]
    %v49 = vld [vmem:[#allocation2 + $0x2c] sm:$0xf]
    %v50 = vld [vmem:[#allocation2 + $0x30] sm:$0xf]
    %v51 = vld [vmem:[#allocation2 + $0x34] sm:$0xf]
    %v52 = vld [vmem:[#allocation2 + $0x38] sm:$0xf]
    %v53 = vld [vmem:[#allocation2 + $0x3c] sm:$0xf]
    %v70 = vunpack.c.l.b16 %v38
    %v71 = vunpack.c.l.b16 %v39
    %v72 = vunpack.c.l.b16 %v40
    %v73 = vunpack.c.l.b16 %v41
    %v74 = vunpack.c.l.b16 %v42
    %v75 = vunpack.c.l.b16 %v43
    %v76 = vunpack.c.l.b16 %v44
    %v77 = vunpack.c.l.b16 %v45
    %v78 = vunpack.c.l.b16 %v46
    %v79 = vunpack.c.l.b16 %v47
    %v80 = vunpack.c.l.b16 %v48
    %v81 = vunpack.c.l.b16 %v49
    %v82 = vunpack.c.l.b16 %v50
    %v83 = vunpack.c.l.b16 %v51
    %v84 = vunpack.c.l.b16 %v52
    %v85 = vunpack.c.l.b16 %v53
    %v86 = vpack.c.b16 %v71, %v70
    %v87 = vpack.c.b16 %v73, %v72
    %v88 = vpack.c.b16 %v75, %v74
    %v89 = vpack.c.b16 %v77, %v76
    %v90 = vpack.c.b16 %v79, %v78
    %v91 = vpack.c.b16 %v81, %v80
    %v92 = vpack.c.b16 %v83, %v82
    %v93 = vpack.c.b16 %v85, %v84
    %102 = vmatpush.bf16.msra.mxu0 %v93
    %103 = vmatpush.bf16.msra.mxu0 %v92
    %104 = vmatpush.bf16.msra.mxu0 %v91
    %105 = vmatpush.bf16.msra.mxu0 %v90
    %106 = vmatpush.bf16.msra.mxu0 %v89
    %107 = vmatpush.bf16.msra.mxu0 %v88
    %108 = vmatpush.bf16.msra.mxu0 %v87
    %109 = vmatpush.bf16.msra.mxu0 %v86
    %110 = vmatmul.bf16.gmra.mxu0 %v37
    %v111 = vpop.f32.mrf.mxu0
    %v112 = vadd.f32 0.0, %v111
    %v113 = vpop.f32.mrf.mxu0
    %114 = vdwg.mxu0
    %p115 = scmp.eq.s32.totalorder 0, 0
    // Predicated region
    $region26: #{tpu_custom_call.1} parent=1 // pred_check
      %p116 = pneg %p115
    $region27: #{tpu_custom_call.1} parent=1 // pred_check_branch
      %118 = sbr.rel (%p116) target = $region29
    $region28: #{tpu_custom_call.1} parent=1 // pred_region
      %119 = vst [vmem:[#allocation5] sm:$0xff] %v112
    $region29: #{tpu_custom_call.1} parent=1 // pred_fallthru
      _
    %p120 = scmp.gt.s32.totalorder 0, 0
    // Predicated region
    $region30: #{tpu_custom_call.1} parent=1 // pred_check
      %p121 = pneg %p120
    $region31: #{tpu_custom_call.1} parent=1 // pred_check_branch
      %123 = sbr.rel (%p121) target = $region33
    $region32: #{tpu_custom_call.1} parent=1 // pred_region
      %v124 = vld [vmem:[#allocation5] sm:$0xff]
      %v125 = vadd.f32 %v124, %v112
      %126 = vst [vmem:[#allocation5] sm:$0xff] %v125
    $region33: #{tpu_custom_call.1} parent=1 // pred_fallthru
      _
    // Predicated region
    $region34: #{tpu_custom_call.1} parent=1 // pred_check
      %p127 = pneg %p115
    $region35: #{tpu_custom_call.1} parent=1 // pred_check_branch
      %129 = sbr.rel (%p127) target = $region37
    $region36: #{tpu_custom_call.1} parent=1 // pred_region
      %v130 = vld [vmem:[%s2] sm:$0x1]
      %v131 = vld [vmem:[#allocation5] sm:$0xff]
      %v132 = vld [vmem:[%s4] sm:$0xff]
      %134 = vset.pattern.permute.xlu0 0
      %135 = vperm.xlu0 %134, %v132
      %v136 = vpop.permute.xlu0 %135
      %v138 = vmul.f32 %v131, %v136
      %v139 = vld [vmem:[%s3] sm:$0x1]
      %v141 = vperm.slane %v139, 0
      %v143 = vmul.f32 %v138, %v141
      %v145 = vperm.slane %v130, 0
      %v147 = vsub.f32 %v145, %v143
      %148 = vst [vmem:[#allocation5] sm:$0xff] %v147
    $region37: #{tpu_custom_call.1} parent=1 // pred_fallthru
      _
    // Predicated region
    $region38: #{tpu_custom_call.1} parent=1 // pred_check
      _
    $region39: #{tpu_custom_call.1} parent=1 // pred_check_branch
      %150 = sbr.rel (0) target = $region41
    $region40: #{tpu_custom_call.1} parent=1 // pred_region
      %152 = vsyncadd [#allocation4], 0
      %s154 = sshll.u32 [#allocation5], 4
      %s155 = int_to_ptr.vmem [resolvable:$true] %s154
      %s156 = sshll.u32 %s5, 4
      %s157 = int_to_ptr.hbm [resolvable:$true] %s156
      %159 = dma.vmem_to_hbm [thread:$0]  %s155, 128, %s157, [#allocation4]
    $region41: #{tpu_custom_call.1} parent=1 // pred_fallthru
      _
    // Predicated region
    $region42: #{tpu_custom_call.1} parent=1 // pred_check
      _
    $region43: #{tpu_custom_call.1} parent=1 // pred_check_branch
      %161 = sbr.rel (0) target = $region45
    $region44: #{tpu_custom_call.1} parent=1 // pred_region
      %163 = dma.done [#allocation4], 128
    $region45: #{tpu_custom_call.1} parent=1 // pred_fallthru
      _
    %164 = vsyncpa [#allocation3], 1
    %165 = vsyncpa [#allocation4], 1

</llo_original>
